<compile_context>
chip_gen: v7x
topology: tpu7x:2x2x1
jax: 0.10.0
libtpu: 0.0.40
codegen_flags: <defaults>
</compile_context>

<pallas_src>
import math
import functools

import jax
import jax.numpy as jnp
from jax import lax
from jax.experimental import pallas as pl
from jax.experimental.pallas import tpu as pltpu


# ---------------------------------------------------------------------------
# Tiled Linear kernel:  out = activation(x @ w.T + b)   (w kept in torch (N, K) layout)
#   x_ref: (tm, tk)   w_ref: (tn, tk)   b_ref: (1, tn)   o_ref: (tm, tn)
#   acc_ref: (tm, tn) f32 VMEM accumulator, resident across the K grid axis.
# ---------------------------------------------------------------------------
def _linear_kernel(x_ref, w_ref, b_ref, o_ref, acc_ref, *, activation):
    k = pl.program_id(2)

    @pl.when(k == 0)
    def _():
        acc_ref[...] = jnp.zeros_like(acc_ref)

    # MXU matmul, contracting the last dim of both operands (x @ w.T), f32 accumulate.
    acc_ref[...] += lax.dot_general(
        x_ref[...], w_ref[...],
        dimension_numbers=(((1,), (1,)), ((), ())),
        preferred_element_type=jnp.float32,
    )

    @pl.when(k == pl.num_programs(2) - 1)
    def _():
        # Fused epilogue: bias add (+ optional SiLU) in f32, single lane-dense store.
        y = acc_ref[...] + b_ref[...]
        if activation == "silu":
            y = y * jax.nn.sigmoid(y)  # exp / recip run on the EUP slot
        o_ref[...] = y.astype(o_ref.dtype)


def _pick_tile(dim, target):
    """Largest tile <= target that divides dim, preferring 256/128/8 granularity.

    Never collapses to a single full-extent monster block for large dims, so
    double-buffering and the (i, j) megacore grid are preserved.
    """
    if dim <= target:
        return dim
    for granule in (256, 128, 8, 1):
        t = (target // granule) * granule
        while t >= granule:
            if dim % t == 0:
                return t
            t -= granule
    return dim  # unreachable: granule == 1 always finds a divisor


def _streamed_spec(shape, index_map, depth=None):
    """BlockSpec for a streamed operand; request deeper multi-buffering when supported."""
    buffered = getattr(pl, "Buffered", None)
    if depth is not None and buffered is not None:
        try:
            return pl.BlockSpec(shape, index_map, pipeline_mode=buffered(depth))
        except TypeError:  # BlockSpec without pipeline_mode support
            pass
    return pl.BlockSpec(shape, index_map)


def pallas_linear(x2d, w, b_row, *, activation=None, out_dtype=None,
                  tm=1024, tn=1024, tk=512):
    """activation(x2d @ w.T + b_row);  x2d: (M, K), w: (N, K) torch layout, b_row: (1, N)."""
    M, K = x2d.shape
    N, K2 = w.shape
    assert K == K2 and b_row.shape == (1, N)
    out_dtype = out_dtype if out_dtype is not None else x2d.dtype

    tm = _pick_tile(M, tm)
    tn = _pick_tile(N, tn)
    tk = _pick_tile(K, tk)
    grid = (M // tm, N // tn, K // tk)

    # Deeper input buffering only pays off on real pipelines (enough grid steps).
    depth = 3 if (grid[0] * grid[1] * grid[2]) >= 4 else None

    kernel = functools.partial(_linear_kernel, activation=activation)
    return pl.pallas_call(
        kernel,
        out_shape=jax.ShapeDtypeStruct((M, N), out_dtype),
        grid_spec=pltpu.PrefetchScalarGridSpec(
            num_scalar_prefetch=0,
            grid=grid,
            in_specs=[
                _streamed_spec((tm, tk), lambda i, j, k: (i, k), depth),  # x row-panels
                _streamed_spec((tn, tk), lambda i, j, k: (j, k), depth),  # w col-panels
                pl.BlockSpec((1, tn), lambda i, j, k: (0, j)),            # bias row
            ],
            out_specs=pl.BlockSpec((tm, tn), lambda i, j, k: (i, j)),
            scratch_shapes=[pltpu.VMEM((tm, tn), jnp.float32)],
        ),
        compiler_params=pltpu.CompilerParams(
            dimension_semantics=("parallel", "parallel", "arbitrary"),
            # <= ~56 MiB keeps headroom under v7x's 64 MiB/TC; far below v5e/v6e's 128 MiB.
            vmem_limit_bytes=56 * 1024 * 1024,
        ),
    )(x2d, w, b_row)


# ---------------------------------------------------------------------------
# FeedForward forward:  dropout(l2(silu(l1(x))))   (dropout = identity in eval)
# torch nn.Linear layout is kept: w: (out_features, in_features), b: (out_features,)
# ---------------------------------------------------------------------------
def prepare_feedforward_params(params, compute_dtype=jnp.bfloat16):
    """One-time weight prep (cast only, NO transpose). Call once, reuse every forward."""
    return {
        "w1": params["w1"].astype(compute_dtype),                # (d_inter, d_in)
        "w2": params["w2"].astype(compute_dtype),                # (d_out, d_inter)
        "b1": params["b1"].reshape(1, -1).astype(jnp.float32),   # (1, d_inter)
        "b2": params["b2"].reshape(1, -1).astype(jnp.float32),   # (1, d_out)
        "compute_dtype": compute_dtype,
    }


def feedforward_forward(x, prepared):
    B, S, d_in = x.shape
    d_out = prepared["w2"].shape[0]
    orig_dtype = x.dtype
    compute_dtype = prepared["compute_dtype"]

    x2d = x.reshape(B * S, d_in).astype(compute_dtype)
    # l1 + bias + SiLU fused in one kernel; intermediate stays lane-dense in compute_dtype.
    h = pallas_linear(x2d, prepared["w1"], prepared["b1"],
                      activation="silu", out_dtype=compute_dtype)
    # l2 + bias fused; dropout is identity in inference mode.
    y = pallas_linear(h, prepared["w2"], prepared["b2"],
                      activation=None, out_dtype=orig_dtype)
    return y.reshape(B, S, d_out)


# Pure-JAX reference for verification (high-precision matmuls).
def feedforward_reference(x, params):
    hp = jax.lax.Precision.HIGHEST
    h = jnp.einsum("bsi,oi->bso", x, params["w1"], precision=hp) + params["b1"]
    h = jax.nn.silu(h)
    y = jnp.einsum("bsi,oi->bso", h, params["w2"], precision=hp) + params["b2"]
    return y  # dropout: identity in eval mode


if __name__ == "__main__":
    # Small, lane-friendly shapes consistent with the module's forward.
    B, S = 2, 8
    in_features, inter_features = 128, 256
    out_features = in_features  # out_features == -1 -> in_features

    key = jax.random.PRNGKey(0)
    kx, kw1, kb1, kw2, kb2 = jax.random.split(key, 5)

    bound1 = 1.0 / math.sqrt(in_features)
    bound2 = 1.0 / math.sqrt(inter_features)
    params = {
        "w1": jax.random.uniform(kw1, (inter_features, in_features), jnp.float32, -bound1, bound1),
        "b1": jax.random.uniform(kb1, (inter_features,), jnp.float32, -bound1, bound1),
        "w2": jax.random.uniform(kw2, (out_features, inter_features), jnp.float32, -bound2, bound2),
        "b2": jax.random.uniform(kb2, (out_features,), jnp.float32, -bound2, bound2),
    }
    x = jax.random.normal(kx, (B, S, in_features), jnp.float32)

    ref = feedforward_reference(x, params)

    # 1) f32 operand path: tight check of the tiled-kernel pipeline (tiling / acc / epilogue).
    out_f32 = jax.block_until_ready(
        feedforward_forward(x, prepare_feedforward_params(params, jnp.float32)))
    assert out_f32.shape == (B, S, out_features)
    assert jnp.allclose(out_f32, ref, atol=2e-2, rtol=2e-2), "f32 path mismatch vs reference"

    # 2) bf16 MXU-operand path (performance configuration): loose check vs f32 reference.
    out_bf16 = jax.block_until_ready(
        feedforward_forward(x, prepare_feedforward_params(params, jnp.bfloat16)))
    assert out_bf16.shape == (B, S, out_features)
    assert jnp.allclose(out_bf16, ref, atol=5e-2, rtol=5e-2), "bf16 path mismatch vs reference"

    print("KERNEL_OK")
</pallas_src>

<mosaic_0001>
module attributes {stable_mosaic.version = 11 : i64} {
  func.func @_linear_kernel(%arg0: i32, %arg1: i32, %arg2: i32, %arg3: memref<16x128xf32, #tpu.memory_space<vmem>>, %arg4: memref<256x128xf32, #tpu.memory_space<vmem>>, %arg5: memref<1x256xf32, #tpu.memory_space<vmem>>, %arg6: memref<16x256xf32, #tpu.memory_space<vmem>>, %arg7: memref<16x256xf32, #tpu.memory_space<vmem>>) attributes {dimension_semantics = [#tpu.dimension_semantics<parallel>, #tpu.dimension_semantics<parallel>, #tpu.dimension_semantics<arbitrary>], iteration_bounds = array<i64: 1, 1, 1>, scalar_prefetch = 0 : i64, scratch_operands = 1 : i64, tpu.core_type = #tpu.core_type<tc>, window_params = [{transform_indices = @transform_0, window_bounds = array<i64: 16, 128>}, {transform_indices = @transform_1, window_bounds = array<i64: 256, 128>}, {transform_indices = @transform_2, window_bounds = array<i64: 1, 256>}, {transform_indices = @transform_3, window_bounds = array<i64: 16, 256>}]} {
    %c0_i32 = arith.constant 0 : i32
    %0 = arith.cmpi eq, %arg2, %c0_i32 : i32
    %1 = arith.extui %0 : i1 to i32
    %c0_i32_0 = arith.constant 0 : i32
    %2 = arith.cmpi ne, %1, %c0_i32_0 : i32
    scf.if %2 {
      %cst_10 = arith.constant 0.000000e+00 : f32
      %12 = vector.broadcast %cst_10 : f32 to vector<16x256xf32>
      %c0_11 = arith.constant 0 : index
      %c0_12 = arith.constant 0 : index
      %13 = vector.load %arg7[%c0_11, %c0_12] : memref<16x256xf32, #tpu.memory_space<vmem>>, vector<16x256xf32>
      tpu.vector_store %arg7[%c0_11, %c0_12], %12 {strides = array<i32>} : memref<16x256xf32, #tpu.memory_space<vmem>>, vector<16x256xf32>,
    } else {
    }
    %c0 = arith.constant 0 : index
    %c0_1 = arith.constant 0 : index
    %3 = vector.load %arg7[%c0, %c0_1] : memref<16x256xf32, #tpu.memory_space<vmem>>, vector<16x256xf32>
    %c0_2 = arith.constant 0 : index
    %c0_3 = arith.constant 0 : index
    %4 = vector.load %arg3[%c0_2, %c0_3] : memref<16x128xf32, #tpu.memory_space<vmem>>, vector<16x128xf32>
    %c0_4 = arith.constant 0 : index
    %c0_5 = arith.constant 0 : index
    %5 = vector.load %arg4[%c0_4, %c0_5] : memref<256x128xf32, #tpu.memory_space<vmem>>, vector<256x128xf32>
    %cst = arith.constant dense<0.000000e+00> : vector<16x256xf32>
    %6 = tpu.matmul %4, %5, %cst {dimension_numbers = #tpu.dot_dimension_numbers<[1], [1], [0], [0], [0, 0, 1, 0], [], []>} : vector<16x128xf32>, vector<256x128xf32>, vector<16x256xf32> -> vector<16x256xf32>
    %7 = arith.addf %3, %6 : vector<16x256xf32>
    %c0_6 = arith.constant 0 : index
    %c0_7 = arith.constant 0 : index
    %8 = vector.load %arg7[%c0_6, %c0_7] : memref<16x256xf32, #tpu.memory_space<vmem>>, vector<16x256xf32>
    tpu.vector_store %arg7[%c0_6, %c0_7], %7 {strides = array<i32>} : memref<16x256xf32, #tpu.memory_space<vmem>>, vector<16x256xf32>,
    %c0_i32_8 = arith.constant 0 : i32
    %9 = arith.cmpi eq, %arg2, %c0_i32_8 : i32
    %10 = arith.extui %9 : i1 to i32
    %c0_i32_9 = arith.constant 0 : i32
    %11 = arith.cmpi ne, %10, %c0_i32_9 : i32
    scf.if %11 {
      %c0_10 = arith.constant 0 : index
      %c0_11 = arith.constant 0 : index
      %12 = vector.load %arg7[%c0_10, %c0_11] : memref<16x256xf32, #tpu.memory_space<vmem>>, vector<16x256xf32>
      %c0_12 = arith.constant 0 : index
      %c0_13 = arith.constant 0 : index
      %13 = vector.load %arg5[%c0_12, %c0_13] : memref<1x256xf32, #tpu.memory_space<vmem>>, vector<1x256xf32>
      %14 = vector.broadcast %13 : vector<1x256xf32> to vector<16x256xf32>
      %15 = arith.addf %12, %14 : vector<16x256xf32>
      %16 = arith.negf %15 : vector<16x256xf32>
      %17 = math.exp %16 : vector<16x256xf32>
      %cst_14 = arith.constant 1.000000e+00 : f32
      %18 = vector.broadcast %cst_14 : f32 to vector<16x256xf32>
      %19 = arith.addf %18, %17 : vector<16x256xf32>
      %20 = arith.divf %18, %19 : vector<16x256xf32>
      %21 = arith.mulf %15, %20 : vector<16x256xf32>
      %c0_15 = arith.constant 0 : index
      %c0_16 = arith.constant 0 : index
      %22 = vector.load %arg6[%c0_15, %c0_16] : memref<16x256xf32, #tpu.memory_space<vmem>>, vector<16x256xf32>
      tpu.vector_store %arg6[%c0_15, %c0_16], %21 {strides = array<i32>} : memref<16x256xf32, #tpu.memory_space<vmem>>, vector<16x256xf32>,
    } else {
    }
    return
  }
  func.func @transform_0(%arg0: i32, %arg1: i32, %arg2: i32) -> (i32, i32) {
    %c0_i32 = arith.constant 0 : i32
    return %arg0, %arg2 : i32, i32
  }
  func.func @transform_1(%arg0: i32, %arg1: i32, %arg2: i32) -> (i32, i32) {
    %c0_i32 = arith.constant 0 : i32
    return %arg1, %arg2 : i32, i32
  }
  func.func @transform_2(%arg0: i32, %arg1: i32, %arg2: i32) -> (i32, i32) {
    %c0_i32 = arith.constant 0 : i32
    %c0_i32_0 = arith.constant 0 : i32
    return %c0_i32, %arg1 : i32, i32
  }
  func.func @transform_3(%arg0: i32, %arg1: i32, %arg2: i32) -> (i32, i32) {
    %c0_i32 = arith.constant 0 : i32
    return %arg0, %arg1 : i32, i32
  }
}

</mosaic_0001>

<llo_original>
// kernel: tpu_custom_call.1
$region0: #{tpu_custom_call.1}
  #allocation0 [shape = 'u32[]', space=smem, size = 0x4, offset = 0x4, fixed_abs, tag = 'smem constant byte address 0x4 - core index']
  #allocation1 [shape = 'u32[144,128]{1,0:T(1,128)}', space=vmem, size = 0x12000, scoped, tag = 'internal scratch']
  #allocation2 [shape = 'f32[16,256]{1,0:T(8,128)}', space=vmem, size = 0x4000, scoped, tag = 'scratch operand']
  %s0 = inlined_call_operand.hbm [shape: f32[16,128], index: 0, kind: input, shape index: {}]
  %s1 = inlined_call_operand.hbm [shape: f32[256,128], index: 1, kind: input, shape index: {}]
  %s2 = inlined_call_operand.vmem [shape: f32[1,256], index: 2, kind: input, shape index: {}]
  %s3 = inlined_call_operand.hbm [shape: f32[16,256], index: 3, kind: output, shape index: {}]
  %s4 = sld [smem:[#allocation0]]
  $region38: #{tpu_custom_call.1} parent=0
    _
  %s6 = ssub.s32 1, %s4
  %s7 = scalar_select 0, %s6, %s4
  $region1: #{tpu_custom_call.1} parent=0
    #allocation3 [shape = 'u8[8192]{0}', space=vmem, size = 0x2000, scoped, tag = 'input window, operand 0, single buffered']
    #allocation4 [shape = 's32[1]{0}', space=sflag, size = 0x4, scoped, tag = 'scoped memory for tpu_custom_call.1']
    #allocation5 [shape = 's32[1]{0}', space=sflag, size = 0x4, scoped, tag = 'scoped memory for tpu_custom_call.1']
    #allocation6 [shape = 'u8[131072]{0}', space=vmem, size = 0x20000, scoped, tag = 'input window, operand 1, single buffered']
    #allocation7 [shape = 's32[1]{0}', space=sflag, size = 0x4, scoped, tag = 'scoped memory for tpu_custom_call.1']
    #allocation8 [shape = 'u8[16384]{0}', space=vmem, size = 0x4000, scoped, tag = 'output window, operand 0, single buffered']
    %8 = vsyncpa [#allocation4], 0
    %9 = vsyncpa [#allocation7], 0
    %10 = vsyncpa [#allocation5], 0
    // Predicated region
    $region2: #{tpu_custom_call.1} parent=1 // pred_check
      _
    $region3: #{tpu_custom_call.1} parent=1 // pred_check_branch
      %12 = sbr.rel (0) target = $region5
    $region4: #{tpu_custom_call.1} parent=1 // pred_region
      %s14 = ssub.s32 256, 256
      %15 = vsyncadd [#allocation4], %s14
      %s16 = sshll.u32 [#allocation3], 4
      %s17 = int_to_ptr.vmem [resolvable:$true] %s16
      %22 = dma.hbm_to_vmem [thread:$0]  %s0, 256, %s17, [#allocation4], 128, 128, 8
    $region5: #{tpu_custom_call.1} parent=1 // pred_fallthru
      _
    // Predicated region
    $region6: #{tpu_custom_call.1} parent=1 // pred_check
      _
    $region7: #{tpu_custom_call.1} parent=1 // pred_check_branch
      %24 = sbr.rel (0) target = $region9
    $region8: #{tpu_custom_call.1} parent=1 // pred_region
      %s26 = ssub.s32 4096, 4096
      %27 = vsyncadd [#allocation7], %s26
      %s28 = sshll.u32 [#allocation6], 4
      %s29 = int_to_ptr.vmem [resolvable:$true] %s28
      %34 = dma.hbm_to_vmem [thread:$0]  %s1, 4096, %s29, [#allocation7], 128, 128, 8
    $region9: #{tpu_custom_call.1} parent=1 // pred_fallthru
      _
    // Predicated region
    $region10: #{tpu_custom_call.1} parent=1 // pred_check
      _
    $region11: #{tpu_custom_call.1} parent=1 // pred_check_branch
      %36 = sbr.rel (0) target = $region13
    $region12: #{tpu_custom_call.1} parent=1 // pred_region
      _
    $region13: #{tpu_custom_call.1} parent=1 // pred_fallthru
      _
    // Predicated region
    $region14: #{tpu_custom_call.1} parent=1 // pred_check
      _
    $region15: #{tpu_custom_call.1} parent=1 // pred_check_branch
      %38 = sbr.rel (0) target = $region17
    $region16: #{tpu_custom_call.1} parent=1 // pred_region
      %39 = dma.done [#allocation4], 256
    $region17: #{tpu_custom_call.1} parent=1 // pred_fallthru
      _
    // Predicated region
    $region18: #{tpu_custom_call.1} parent=1 // pred_check
      _
    $region19: #{tpu_custom_call.1} parent=1 // pred_check_branch
      %41 = sbr.rel (0) target = $region21
    $region20: #{tpu_custom_call.1} parent=1 // pred_region
      %42 = dma.done [#allocation7], 4096
    $region21: #{tpu_custom_call.1} parent=1 // pred_fallthru
      _
    %p43 = scmp.eq.s32.totalorder 0, 0
    // Predicated region
    $region22: #{tpu_custom_call.1} parent=1 // pred_check
      %p44 = pneg %p43
    $region23: #{tpu_custom_call.1} parent=1 // pred_check_branch
      %46 = sbr.rel (%p44) target = $region25
    $region24: #{tpu_custom_call.1} parent=1 // pred_region
      %47 = vst [vmem:[#allocation2] sm:$0xff] 0.0
      %48 = vst [vmem:[#allocation2 + $0x8] sm:$0xff] 0.0
      %49 = vst [vmem:[#allocation2 + $0x10] sm:$0xff] 0.0
      %50 = vst [vmem:[#allocation2 + $0x18] sm:$0xff] 0.0
    $region25: #{tpu_custom_call.1} parent=1 // pred_fallthru
      _
    %v51 = vld [vmem:[#allocation2] sm:$0xff]
    %v52 = vld [vmem:[#allocation2 + $0x8] sm:$0xff]
    %v53 = vld [vmem:[#allocation2 + $0x10] sm:$0xff]
    %v54 = vld [vmem:[#allocation2 + $0x18] sm:$0xff]
    %v55 = vld [vmem:[#allocation3] sm:$0xff]
    %v56 = vld [vmem:[#allocation3 + $0x8] sm:$0xff]
    %v57 = vld [vmem:[#allocation6] sm:$0xff]
    %v58 = vld [vmem:[#allocation6 + $0x8] sm:$0xff]
    %v59 = vld [vmem:[#allocation6 + $0x10] sm:$0xff]
    %v60 = vld [vmem:[#allocation6 + $0x18] sm:$0xff]
    %v61 = vld [vmem:[#allocation6 + $0x20] sm:$0xff]
    %v62 = vld [vmem:[#allocation6 + $0x28] sm:$0xff]
    %v63 = vld [vmem:[#allocation6 + $0x30] sm:$0xff]
    %v64 = vld [vmem:[#allocation6 + $0x38] sm:$0xff]
    %v65 = vld [vmem:[#allocation6 + $0x40] sm:$0xff]
    %v66 = vld [vmem:[#allocation6 + $0x48] sm:$0xff]
    %v67 = vld [vmem:[#allocation6 + $0x50] sm:$0xff]
    %v68 = vld [vmem:[#allocation6 + $0x58] sm:$0xff]
    %v69 = vld [vmem:[#allocation6 + $0x60] sm:$0xff]
    %v70 = vld [vmem:[#allocation6 + $0x68] sm:$0xff]
    %v71 = vld [vmem:[#allocation6 + $0x70] sm:$0xff]
    %v72 = vld [vmem:[#allocation6 + $0x78] sm:$0xff]
    %v73 = vld [vmem:[#allocation6 + $0x80] sm:$0xff]
    %v74 = vld [vmem:[#allocation6 + $0x88] sm:$0xff]
    %v75 = vld [vmem:[#allocation6 + $0x90] sm:$0xff]
    %v76 = vld [vmem:[#allocation6 + $0x98] sm:$0xff]
    %v77 = vld [vmem:[#allocation6 + $0xa0] sm:$0xff]
    %v78 = vld [vmem:[#allocation6 + $0xa8] sm:$0xff]
    %v79 = vld [vmem:[#allocation6 + $0xb0] sm:$0xff]
    %v80 = vld [vmem:[#allocation6 + $0xb8] sm:$0xff]
    %v81 = vld [vmem:[#allocation6 + $0xc0] sm:$0xff]
    %v82 = vld [vmem:[#allocation6 + $0xc8] sm:$0xff]
    %v83 = vld [vmem:[#allocation6 + $0xd0] sm:$0xff]
    %v84 = vld [vmem:[#allocation6 + $0xd8] sm:$0xff]
    %v85 = vld [vmem:[#allocation6 + $0xe0] sm:$0xff]
    %v86 = vld [vmem:[#allocation6 + $0xe8] sm:$0xff]
    %v87 = vld [vmem:[#allocation6 + $0xf0] sm:$0xff]
    %v88 = vld [vmem:[#allocation6 + $0xf8] sm:$0xff]
    %89 = vmatprep.subr.mxu0 0.0
    %90 = vmatpush1.xpose.msra.mxu0 %v57
    %91 = vmatprep.subr.mxu0 0.0
    %92 = vmatpush1.xpose.msra.mxu0 %v58
    %93 = vmatprep.subr.mxu0 0.0
    %94 = vmatpush1.xpose.msra.mxu0 %v59
    %95 = vmatprep.subr.mxu0 0.0
    %96 = vmatpush1.xpose.msra.mxu0 %v60
    %97 = vmatprep.subr.mxu0 0.0
    %98 = vmatpush1.xpose.msra.mxu0 %v61
    %99 = vmatprep.subr.mxu0 0.0
    %100 = vmatpush1.xpose.msra.mxu0 %v62
    %101 = vmatprep.subr.mxu0 0.0
    %102 = vmatpush1.xpose.msra.mxu0 %v63
    %103 = vmatprep.subr.mxu0 0.0
    %104 = vmatpush1.xpose.msra.mxu0 %v64
    %105 = vmatprep.subr.mxu0 0.0
    %106 = vmatpush1.xpose.msra.mxu0 %v65
    %107 = vmatprep.subr.mxu0 0.0
    %108 = vmatpush1.xpose.msra.mxu0 %v66
    %109 = vmatprep.subr.mxu0 0.0
    %110 = vmatpush1.xpose.msra.mxu0 %v67
    %111 = vmatprep.subr.mxu0 0.0
    %112 = vmatpush1.xpose.msra.mxu0 %v68
    %113 = vmatprep.subr.mxu0 0.0
    %114 = vmatpush1.xpose.msra.mxu0 %v69
    %115 = vmatprep.subr.mxu0 0.0
    %116 = vmatpush1.xpose.msra.mxu0 %v70
    %117 = vmatprep.subr.mxu0 0.0
    %118 = vmatpush1.xpose.msra.mxu0 %v71
    %119 = vmatprep.subr.mxu0 0.0
    %120 = vmatpush1.xpose.msra.mxu0 %v72
    %121 = vmatprep.subr.mxu0 0.0
    %122 = vmatpush1.xpose.msra.mxu0 %v73
    %123 = vmatprep.subr.mxu0 0.0
    %124 = vmatpush1.xpose.msra.mxu0 %v74
    %125 = vmatprep.subr.mxu0 0.0
    %126 = vmatpush1.xpose.msra.mxu0 %v75
    %127 = vmatprep.subr.mxu0 0.0
    %128 = vmatpush1.xpose.msra.mxu0 %v76
    %129 = vmatprep.subr.mxu0 0.0
    %130 = vmatpush1.xpose.msra.mxu0 %v77
    %131 = vmatprep.subr.mxu0 0.0
    %132 = vmatpush1.xpose.msra.mxu0 %v78
    %133 = vmatprep.subr.mxu0 0.0
    %134 = vmatpush1.xpose.msra.mxu0 %v79
    %135 = vmatprep.subr.mxu0 0.0
    %136 = vmatpush1.xpose.msra.mxu0 %v80
    %137 = vmatprep.subr.mxu0 0.0
    %138 = vmatpush1.xpose.msra.mxu0 %v81
    %139 = vmatprep.subr.mxu0 0.0
    %140 = vmatpush1.xpose.msra.mxu0 %v82
    %141 = vmatprep.subr.mxu0 0.0
    %142 = vmatpush1.xpose.msra.mxu0 %v83
    %143 = vmatprep.subr.mxu0 0.0
    %144 = vmatpush1.xpose.msra.mxu0 %v84
    %145 = vmatprep.subr.mxu0 0.0
    %146 = vmatpush1.xpose.msra.mxu0 %v85
    %147 = vmatprep.subr.mxu0 0.0
    %148 = vmatpush1.xpose.msra.mxu0 %v86
    %149 = vmatprep.subr.mxu0 0.0
    %150 = vmatpush1.xpose.msra.mxu0 %v87
    %151 = vmatprep.subr.mxu0 0.0
    %152 = vmatpush1.xpose.msra.mxu0 %v88
    %153 = vmatprep.mubr.f32.mxu0 0.0
    %154 = vmatmul.mubr.f32.gmra.mrb[0].mxu0 %v55
    %v155 = vpop.f32.mrb[0].mxu0
    %v156 = vadd.f32 0.0, %v155
    %v157 = vpop.f32.mrb[0].mxu0
    %v158 = vadd.f32 0.0, %v157
    %159 = vmatprep.mubr.f32.mxu0 0.0
    %160 = vmatmul.mubr.f32.gmra.mrb[0].mxu0 %v56
    %v161 = vpop.f32.mrb[0].mxu0
    %v162 = vadd.f32 0.0, %v161
    %v163 = vpop.f32.mrb[0].mxu0
    %v164 = vadd.f32 0.0, %v163
    %165 = vdwg.mxu0
    %v166 = vadd.f32 %v51, %v156
    %v167 = vadd.f32 %v52, %v158
    %v168 = vadd.f32 %v53, %v162
    %v169 = vadd.f32 %v54, %v164
    %170 = vst [vmem:[#allocation2] sm:$0xff] %v166
    %171 = vst [vmem:[#allocation2 + $0x8] sm:$0xff] %v167
    %172 = vst [vmem:[#allocation2 + $0x10] sm:$0xff] %v168
    %173 = vst [vmem:[#allocation2 + $0x18] sm:$0xff] %v169
    // Predicated region
    $region26: #{tpu_custom_call.1} parent=1 // pred_check
      %p174 = pneg %p43
    $region27: #{tpu_custom_call.1} parent=1 // pred_check_branch
      %176 = sbr.rel (%p174) target = $region29
    $region28: #{tpu_custom_call.1} parent=1 // pred_region
      %v177 = vld [vmem:[#allocation2] sm:$0xff]
      %v178 = vld [vmem:[#allocation2 + $0x8] sm:$0xff]
      %v179 = vld [vmem:[#allocation2 + $0x10] sm:$0xff]
      %v180 = vld [vmem:[#allocation2 + $0x18] sm:$0xff]
      %v181 = vld [vmem:[%s2] sm:$0x3]
      %v183 = vlaneseq
      %v184 = vshrl.u32 %v183, 7
      %v185 = vsub.s32 0, %v184
      %v186 = vrot.slane %v181, %v185
      %v187 = vlaneseq
      %v188 = vshrl.u32 %v187, 7
      %v189 = vsub.s32 1, %v188
      %v190 = vrot.slane %v181, %v189
      %v193 = vadd.f32 %v177, %v186
      %v194 = vadd.f32 %v178, %v190
      %v195 = vadd.f32 %v179, %v186
      %v196 = vadd.f32 %v180, %v190
      %v197 = vxor.u32 %v193, 2147483648
      %v198 = vxor.u32 %v194, 2147483648
      %v199 = vxor.u32 %v195, 2147483648
      %v200 = vxor.u32 %v196, 2147483648
      %v201 = vmul.f32 %v197, 1.442695
      %v202 = vpow.pop %v201
      %v203 = vmul.f32 %v198, 1.442695
      %v204 = vpow.pop %v203
      %v205 = vmul.f32 %v199, 1.442695
      %v206 = vpow.pop %v205
      %v207 = vmul.f32 %v200, 1.442695
      %v208 = vpow.pop %v207
      %v209 = vadd.f32 %v202, 1.0
      %v210 = vadd.f32 %v204, 1.0
      %v211 = vadd.f32 %v206, 1.0
      %v212 = vadd.f32 %v208, 1.0
      %v213 = vrcp.pop %v209
      %v214 = vmul.f32 1.0, %v213
      %v215 = vrcp.pop %v210
      %v216 = vmul.f32 1.0, %v215
      %v217 = vrcp.pop %v211
      %v218 = vmul.f32 1.0, %v217
      %v219 = vrcp.pop %v212
      %v220 = vmul.f32 1.0, %v219
      %v221 = vmul.f32 %v193, %v214
      %v222 = vmul.f32 %v194, %v216
      %v223 = vmul.f32 %v195, %v218
      %v224 = vmul.f32 %v196, %v220
      %225 = vst [vmem:[#allocation8] sm:$0xff] %v221
      %226 = vst [vmem:[#allocation8 + $0x8] sm:$0xff] %v222
      %227 = vst [vmem:[#allocation8 + $0x10] sm:$0xff] %v223
      %228 = vst [vmem:[#allocation8 + $0x18] sm:$0xff] %v224
    $region29: #{tpu_custom_call.1} parent=1 // pred_fallthru
      _
    // Predicated region
    $region30: #{tpu_custom_call.1} parent=1 // pred_check
      _
    $region31: #{tpu_custom_call.1} parent=1 // pred_check_branch
      %230 = sbr.rel (0) target = $region33
    $region32: #{tpu_custom_call.1} parent=1 // pred_region
      %s232 = ssub.s32 512, 512
      %233 = vsyncadd [#allocation5], %s232
      %s234 = sshll.u32 [#allocation8], 4
      %s235 = int_to_ptr.vmem [resolvable:$true] %s234
      %240 = dma.vmem_to_hbm [thread:$0]  %s235, 512, %s3, [#allocation5], 256, 256, 16
    $region33: #{tpu_custom_call.1} parent=1 // pred_fallthru
      _
    // Predicated region
    $region34: #{tpu_custom_call.1} parent=1 // pred_check
      _
    $region35: #{tpu_custom_call.1} parent=1 // pred_check_branch
      %242 = sbr.rel (0) target = $region37
    $region36: #{tpu_custom_call.1} parent=1 // pred_region
      %243 = dma.done [#allocation5], 512
    $region37: #{tpu_custom_call.1} parent=1 // pred_fallthru
      _
    %244 = vsyncpa [#allocation4], 1
    %245 = vsyncpa [#allocation7], 1
    %246 = vsyncpa [#allocation5], 1

</llo_original>
